<compile_context>
chip_gen: v6e
topology: v6e:2x2x1
jax: 0.10.0
libtpu: 0.0.40
codegen_flags: <defaults>
</compile_context>

<pallas_src>
import functools
import math

import jax
import jax.numpy as jnp
from jax.experimental import pallas as pl
from jax.experimental.pallas import tpu as pltpu


def _tree_fold_rows(col, tm):
    """Pairwise-fold a (tm, 1) column into an (8, 1) sublane-group slab."""
    parts = [col[g * 8:(g + 1) * 8, :] for g in range(tm // 8)]
    while len(parts) > 1:
        nxt = [a + b for a, b in zip(parts[0::2], parts[1::2])]
        if len(parts) % 2:
            nxt.append(parts[-1])
        parts = nxt
    return parts[0]


def _focal_ls_kernel(x_ref, tgt_ref, cols_ref, psum_ref, pcnt_ref, *,
                     padding_idx, confidence, smooth_val, const_row, gamma):
    x = x_ref[...].astype(jnp.float32)          # (TM, C) f32 (upcast in VMEM)
    tgt = tgt_ref[...]                          # (TM, 1) i32
    cols = cols_ref[...]                        # (1, C) i32 (hoisted iota)
    tm, _ = x.shape

    ignore = tgt == padding_idx                 # (TM, 1) bool
    tgt0 = jnp.where(ignore, 0, tgt)            # masked_fill(ignore, 0)

    # log_softmax along the class axis -- a single exp per element, reused
    # for both the denominator and the probabilities.
    m = jnp.max(x, axis=1, keepdims=True)
    z = x - m
    ez = jnp.exp(z)
    s = jnp.sum(ez, axis=1, keepdims=True)
    logp = z - jnp.log(s)
    probs = ez * pl.reciprocal(s, approx=False)     # exact per-row reciprocal

    # Focal weight: explicit multiplies for small integer gamma (no pow).
    ig = int(gamma)
    if float(ig) == float(gamma) and 0 <= ig <= 8:
        if ig == 0:
            fw = None                                # weight == 1
        else:
            w = 1.0 - probs
            fw = w
            for _ in range(ig - 1):
                fw = fw * w
    else:
        fw = jnp.power(jnp.maximum(1.0 - probs, 0.0), gamma)  # non-integer gamma

    inp = logp if fw is None else logp * fw          # (TM, C)

    # Fused KL-with-label-smoothing:
    #   sum_c td*(log td - inp) = const_row - [sv * sum_c(inp)
    #                                          + (conf - sv) * inp[target]]
    is_tgt = cols == tgt0                            # (TM, C) broadcast compare
    s_tgt = jnp.sum(jnp.where(is_tgt, inp, 0.0), axis=1, keepdims=True)  # (TM,1)
    if smooth_val > 0.0:
        s_all = jnp.sum(inp, axis=1, keepdims=True)                      # (TM,1)
        cross = smooth_val * s_all + (confidence - smooth_val) * s_tgt
    else:
        cross = confidence * s_tgt
    row_loss = const_row - cross                     # (TM, 1)

    nign = jnp.where(ignore, 0.0, 1.0)               # non-ignored indicator
    row_loss = jnp.where(ignore, 0.0, row_loss)      # mask ignored rows

    # Tiny per-block partials (8, 1); final reduce + divide happen in JAX.
    psum_ref[...] = _tree_fold_rows(row_loss, tm)
    pcnt_ref[...] = _tree_fold_rows(nign, tm)


def focal_label_smoothing_loss(x, target, *, size, padding_idx, smoothing,
                               normalize_length=False, gamma=2.0,
                               tile_m=None, vmem_limit_bytes=None):
    B, S, C = x.shape
    assert C == size
    N = B * S

    xf = x.reshape(N, C)                        # no dtype cast, no padding of x
    tf = target.reshape(N, 1).astype(jnp.int32)
    cols = jnp.arange(C, dtype=jnp.int32).reshape(1, C)

    # Per-generation VMEM budgeting: 128 MiB on v5e/v6e, 64 MiB per TC on v7x.
    try:
        info = pltpu.get_tpu_info()
        vmem_cap = int(getattr(info, "vmem_capacity_bytes", 64 * 1024 * 1024))
    except Exception:  # pragma: no cover - conservative fallback
        vmem_cap = 64 * 1024 * 1024
    if vmem_limit_bytes is None:
        vmem_limit_bytes = min(100 * 1024 * 1024, (vmem_cap * 3) // 4)

    if tile_m is None:
        # Working set: double-buffered input block (original dtype) plus
        # roughly ~6 concurrent f32 (TM, C) intermediates.
        budget = vmem_limit_bytes // 2
        xb = jnp.dtype(x.dtype).itemsize
        per_row = C * (2 * xb + 6 * 4)
        tile_m = budget // max(per_row, 1)
        tile_m = max(8, min(4096, (tile_m // 8) * 8))
    # Don't make the tile bigger than the (row-rounded) problem.
    tile_m = min(tile_m, ((N + 7) // 8) * 8)
    tile_m = max(8, (tile_m // 8) * 8)

    nb = (N + tile_m - 1) // tile_m             # grid size (row blocks)
    Np = nb * tile_m
    if Np != N:
        # Only the tiny target array is padded; padded rows use padding_idx so
        # the garbage tail of the (unpadded) x never contributes.
        tf = jnp.pad(tf, ((0, Np - N), (0, 0)), constant_values=padding_idx)

    confidence = 1.0 - smoothing
    smooth_val = smoothing / (size - 1)
    const_row = 0.0                             # sum_c td*log(td), per row
    if confidence > 0.0:
        const_row += confidence * math.log(confidence)
    if smooth_val > 0.0:
        const_row += (size - 1) * smooth_val * math.log(smooth_val)

    kernel = functools.partial(
        _focal_ls_kernel,
        padding_idx=padding_idx,
        confidence=float(confidence),
        smooth_val=float(smooth_val),
        const_row=float(const_row),
        gamma=float(gamma),
    )

    psum, pcnt = pl.pallas_call(
        kernel,
        out_shape=(jax.ShapeDtypeStruct((nb * 8, 1), jnp.float32),
                   jax.ShapeDtypeStruct((nb * 8, 1), jnp.float32)),
        grid_spec=pltpu.PrefetchScalarGridSpec(
            num_scalar_prefetch=0,
            grid=(nb,),
            in_specs=[
                pl.BlockSpec((tile_m, C), lambda i: (i, 0)),
                pl.BlockSpec((tile_m, 1), lambda i: (i, 0)),
                pl.BlockSpec((1, C), lambda i: (0, 0)),
            ],
            out_specs=[
                pl.BlockSpec((8, 1), lambda i: (i, 0)),
                pl.BlockSpec((8, 1), lambda i: (i, 0)),
            ],
        ),
        compiler_params=pltpu.CompilerParams(
            dimension_semantics=("parallel",),      # row blocks -> megacore split
            vmem_limit_bytes=int(vmem_limit_bytes),
        ),
    )(xf, tf, cols)

    total = jnp.sum(psum)
    if normalize_length:
        # Guard the degenerate all-padding case (reference would divide by 0).
        denom = jnp.maximum(jnp.sum(pcnt), 1.0)
    else:
        denom = jnp.float32(B)
    return total / denom


def _reference(x, target, *, size, padding_idx, smoothing,
               normalize_length=False, gamma=2.0):
    B, S, C = x.shape
    xf = x.reshape(-1, C).astype(jnp.float32)
    t = target.reshape(-1)
    ignore = t == padding_idx
    total = t.shape[0] - jnp.sum(ignore)
    t0 = jnp.where(ignore, 0, t)
    confidence = 1.0 - smoothing
    smooth_val = smoothing / (size - 1)
    true_dist = jnp.full_like(xf, smooth_val)
    true_dist = true_dist.at[jnp.arange(xf.shape[0]), t0].set(confidence)
    logp = jax.nn.log_softmax(xf, axis=1)
    probs = jnp.exp(logp)
    fw = (1.0 - probs) ** gamma
    kl = true_dist * (jnp.log(true_dist) - logp * fw)
    kl = jnp.where(ignore[:, None], 0.0, kl)
    denom = total if normalize_length else B
    return jnp.sum(kl) / denom


if __name__ == "__main__":
    key = jax.random.PRNGKey(0)
    batch, seqlen, num_classes = 2, 8, 32
    padding_idx = -1
    smoothing = 0.1
    gamma = 2.0

    kx, kt, km = jax.random.split(key, 3)
    x = jax.random.normal(kx, (batch, seqlen, num_classes), dtype=jnp.float32)
    target = jax.random.randint(kt, (batch, seqlen), 0, num_classes,
                                dtype=jnp.int32)
    # Mask some positions with padding_idx (ignored)
    pad_mask = jax.random.bernoulli(km, 0.25, (batch, seqlen))
    target = jnp.where(pad_mask, padding_idx, target)

    loss = focal_label_smoothing_loss(
        x, target, size=num_classes, padding_idx=padding_idx,
        smoothing=smoothing, normalize_length=False, gamma=gamma)
    loss = jax.block_until_ready(loss)

    ref = _reference(x, target, size=num_classes, padding_idx=padding_idx,
                     smoothing=smoothing, normalize_length=False, gamma=gamma)
    assert jnp.allclose(loss, ref, rtol=1e-5, atol=1e-5), (loss, ref)

    # Also check the length-normalized variant.
    loss_n = focal_label_smoothing_loss(
        x, target, size=num_classes, padding_idx=padding_idx,
        smoothing=smoothing, normalize_length=True, gamma=gamma)
    loss_n = jax.block_until_ready(loss_n)
    ref_n = _reference(x, target, size=num_classes, padding_idx=padding_idx,
                       smoothing=smoothing, normalize_length=True, gamma=gamma)
    assert jnp.allclose(loss_n, ref_n, rtol=1e-5, atol=1e-5), (loss_n, ref_n)

    # TODO(synk): backward pass / autograd is out of scope (forward only).
    print("KERNEL_OK")
</pallas_src>

<mosaic_0001>
module attributes {stable_mosaic.version = 11 : i64} {
  func.func @_focal_ls_kernel(%arg0: i32, %arg1: memref<16x32xf32, #tpu.memory_space<vmem>>, %arg2: memref<16x1xi32, #tpu.memory_space<vmem>>, %arg3: memref<1x32xi32, #tpu.memory_space<vmem>>, %arg4: memref<8x1xf32, #tpu.memory_space<vmem>>, %arg5: memref<8x1xf32, #tpu.memory_space<vmem>>) attributes {dimension_semantics = [#tpu.dimension_semantics<parallel>], iteration_bounds = array<i64: 1>, scalar_prefetch = 0 : i64, scratch_operands = 0 : i64, tpu.core_type = #tpu.core_type<tc>, window_params = [{transform_indices = @transform_0, window_bounds = array<i64: 16, 32>}, {transform_indices = @transform_1, window_bounds = array<i64: 16, 1>}, {pipeline_mode = #tpu.pipeline_mode<synchronous>, transform_indices = @transform_2, window_bounds = array<i64: 1, 32>}, {transform_indices = @transform_3, window_bounds = array<i64: 8, 1>}, {transform_indices = @transform_4, window_bounds = array<i64: 8, 1>}]} {
    %c0 = arith.constant 0 : index
    %c0_0 = arith.constant 0 : index
    %0 = vector.load %arg1[%c0, %c0_0] : memref<16x32xf32, #tpu.memory_space<vmem>>, vector<16x32xf32>
    %c0_1 = arith.constant 0 : index
    %c0_2 = arith.constant 0 : index
    %1 = vector.load %arg2[%c0_1, %c0_2] : memref<16x1xi32, #tpu.memory_space<vmem>>, vector<16x1xi32>
    %c0_3 = arith.constant 0 : index
    %c0_4 = arith.constant 0 : index
    %2 = vector.load %arg3[%c0_3, %c0_4] : memref<1x32xi32, #tpu.memory_space<vmem>>, vector<1x32xi32>
    %c-1_i32 = arith.constant -1 : i32
    %3 = vector.broadcast %c-1_i32 : i32 to vector<16x1xi32>
    %4 = arith.cmpi eq, %1, %3 : vector<16x1xi32>
    %c0_i32 = arith.constant 0 : i32
    %5 = vector.broadcast %c0_i32 : i32 to vector<16x1xi32>
    %6 = arith.select %4, %5, %1 : vector<16x1xi1>, vector<16x1xi32>
    %cst = arith.constant dense<0xFF800000> : vector<16xf32>
    %7 = vector.multi_reduction <maximumf>, %0, %cst [1] : vector<16x32xf32> to vector<16xf32>
    %8 = vector.shape_cast %7 : vector<16xf32> to vector<16x1xf32>
    %9 = vector.broadcast %8 : vector<16x1xf32> to vector<16x32xf32>
    %10 = arith.subf %0, %9 : vector<16x32xf32>
    %11 = math.exp %10 : vector<16x32xf32>
    %cst_5 = arith.constant dense<0.000000e+00> : vector<16xf32>
    %12 = vector.multi_reduction <add>, %11, %cst_5 [1] : vector<16x32xf32> to vector<16xf32>
    %13 = vector.shape_cast %12 : vector<16xf32> to vector<16x1xf32>
    %14 = math.log %13 : vector<16x1xf32>
    %15 = vector.broadcast %14 : vector<16x1xf32> to vector<16x32xf32>
    %16 = arith.subf %10, %15 : vector<16x32xf32>
    %17 = tpu.reciprocal %13 : vector<16x1xf32> -> vector<16x1xf32>
    %18 = vector.broadcast %17 : vector<16x1xf32> to vector<16x32xf32>
    %19 = arith.mulf %11, %18 : vector<16x32xf32>
    %cst_6 = arith.constant 1.000000e+00 : f32
    %20 = vector.broadcast %cst_6 : f32 to vector<16x32xf32>
    %21 = arith.subf %20, %19 : vector<16x32xf32>
    %22 = arith.mulf %21, %21 : vector<16x32xf32>
    %23 = arith.mulf %16, %22 : vector<16x32xf32>
    %24 = vector.broadcast %2 : vector<1x32xi32> to vector<16x32xi32>
    %25 = vector.broadcast %6 : vector<16x1xi32> to vector<16x32xi32>
    %26 = arith.cmpi eq, %24, %25 : vector<16x32xi32>
    %cst_7 = arith.constant 0.000000e+00 : f32
    %27 = vector.broadcast %cst_7 : f32 to vector<16x32xf32>
    %28 = arith.select %26, %23, %27 : vector<16x32xi1>, vector<16x32xf32>
    %cst_8 = arith.constant dense<0.000000e+00> : vector<16xf32>
    %29 = vector.multi_reduction <add>, %28, %cst_8 [1] : vector<16x32xf32> to vector<16xf32>
    %30 = vector.shape_cast %29 : vector<16xf32> to vector<16x1xf32>
    %cst_9 = arith.constant dense<0.000000e+00> : vector<16xf32>
    %31 = vector.multi_reduction <add>, %23, %cst_9 [1] : vector<16x32xf32> to vector<16xf32>
    %32 = vector.shape_cast %31 : vector<16xf32> to vector<16x1xf32>
    %cst_10 = arith.constant 0.0032258064 : f32
    %33 = vector.broadcast %cst_10 : f32 to vector<16x1xf32>
    %34 = arith.mulf %33, %32 : vector<16x1xf32>
    %cst_11 = arith.constant 0.896774172 : f32
    %35 = vector.broadcast %cst_11 : f32 to vector<16x1xf32>
    %36 = arith.mulf %35, %30 : vector<16x1xf32>
    %37 = arith.addf %34, %36 : vector<16x1xf32>
    %cst_12 = arith.constant -0.668481708 : f32
    %38 = vector.broadcast %cst_12 : f32 to vector<16x1xf32>
    %39 = arith.subf %38, %37 : vector<16x1xf32>
    %cst_13 = arith.constant 0.000000e+00 : f32
    %cst_14 = arith.constant 1.000000e+00 : f32
    %40 = vector.broadcast %cst_13 : f32 to vector<16x1xf32>
    %41 = vector.broadcast %cst_14 : f32 to vector<16x1xf32>
    %42 = arith.select %4, %40, %41 : vector<16x1xi1>, vector<16x1xf32>
    %cst_15 = arith.constant 0.000000e+00 : f32
    %43 = vector.broadcast %cst_15 : f32 to vector<16x1xf32>
    %44 = arith.select %4, %43, %39 : vector<16x1xi1>, vector<16x1xf32>
    %45 = vector.extract_strided_slice %44 {offsets = [0, 0], sizes = [8, 1], strides = [1, 1]} : vector<16x1xf32> to vector<8x1xf32>
    %46 = vector.extract_strided_slice %44 {offsets = [8, 0], sizes = [8, 1], strides = [1, 1]} : vector<16x1xf32> to vector<8x1xf32>
    %47 = arith.addf %45, %46 : vector<8x1xf32>
    %c0_16 = arith.constant 0 : index
    %c0_17 = arith.constant 0 : index
    %48 = vector.load %arg4[%c0_16, %c0_17] : memref<8x1xf32, #tpu.memory_space<vmem>>, vector<8x1xf32>
    tpu.vector_store %arg4[%c0_16, %c0_17], %47 {strides = array<i32>} : memref<8x1xf32, #tpu.memory_space<vmem>>, vector<8x1xf32>,
    %49 = vector.extract_strided_slice %42 {offsets = [0, 0], sizes = [8, 1], strides = [1, 1]} : vector<16x1xf32> to vector<8x1xf32>
    %50 = vector.extract_strided_slice %42 {offsets = [8, 0], sizes = [8, 1], strides = [1, 1]} : vector<16x1xf32> to vector<8x1xf32>
    %51 = arith.addf %49, %50 : vector<8x1xf32>
    %c0_18 = arith.constant 0 : index
    %c0_19 = arith.constant 0 : index
    %52 = vector.load %arg5[%c0_18, %c0_19] : memref<8x1xf32, #tpu.memory_space<vmem>>, vector<8x1xf32>
    tpu.vector_store %arg5[%c0_18, %c0_19], %51 {strides = array<i32>} : memref<8x1xf32, #tpu.memory_space<vmem>>, vector<8x1xf32>,
    return
  }
  func.func @transform_0(%arg0: i32) -> (i32, i32) {
    %c0_i32 = arith.constant 0 : i32
    %c0_i32_0 = arith.constant 0 : i32
    return %arg0, %c0_i32 : i32, i32
  }
  func.func @transform_1(%arg0: i32) -> (i32, i32) {
    %c0_i32 = arith.constant 0 : i32
    %c0_i32_0 = arith.constant 0 : i32
    return %arg0, %c0_i32 : i32, i32
  }
  func.func @transform_2(%arg0: i32) -> (i32, i32) {
    %c0_i32 = arith.constant 0 : i32
    %c0_i32_0 = arith.constant 0 : i32
    %c0_i32_1 = arith.constant 0 : i32
    return %c0_i32, %c0_i32_0 : i32, i32
  }
  func.func @transform_3(%arg0: i32) -> (i32, i32) {
    %c0_i32 = arith.constant 0 : i32
    %c0_i32_0 = arith.constant 0 : i32
    return %arg0, %c0_i32 : i32, i32
  }
  func.func @transform_4(%arg0: i32) -> (i32, i32) {
    %c0_i32 = arith.constant 0 : i32
    %c0_i32_0 = arith.constant 0 : i32
    return %arg0, %c0_i32 : i32, i32
  }
}

</mosaic_0001>

<llo_original>
// kernel: tpu_custom_call.1
$region0: #{tpu_custom_call.1}
  #allocation0 [shape = 'u32[]', space=smem, size = 0x4, offset = 0x4, fixed_abs, tag = 'smem constant byte address 0x4 - core index']
  #allocation1 [shape = 'u32[144,128]{1,0:T(1,128)}', space=vmem, size = 0x12000, scoped, tag = 'internal scratch']
  %s0 = inlined_call_operand.vmem [shape: f32[16,32], index: 0, kind: input, shape index: {}]
  %s1 = inlined_call_operand.vmem [shape: s32[16,1], index: 1, kind: input, shape index: {}]
  %s2 = inlined_call_operand.vmem [shape: s32[1,32], index: 2, kind: input, shape index: {}]
  %s3 = inlined_call_operand.vmem [shape: f32[8,1], index: 3, kind: output, shape index: {0}]
  %s4 = inlined_call_operand.vmem [shape: f32[8,1], index: 4, kind: output, shape index: {1}]
  %5 = xla_tuple %s3, %s4
  %s6 = sld [smem:[#allocation0]]
  $region30: #{tpu_custom_call.1} parent=0
    _
  %s8 = ssub.s32 1, %s6
  %s9 = scalar_select 0, %s8, %s6
  // Predicated region
  $region2: #{tpu_custom_call.1} parent=0 // pred_check
    _
  $region3: #{tpu_custom_call.1} parent=0 // pred_check_branch
    %11 = sbr.rel (0) target = $region5
  $region4: #{tpu_custom_call.1} parent=0 // pred_region
    _
  $region5: #{tpu_custom_call.1} parent=0 // pred_fallthru
    _
  // Predicated region
  $region6: #{tpu_custom_call.1} parent=0 // pred_check
    _
  $region7: #{tpu_custom_call.1} parent=0 // pred_check_branch
    %13 = sbr.rel (0) target = $region9
  $region8: #{tpu_custom_call.1} parent=0 // pred_region
    _
  $region9: #{tpu_custom_call.1} parent=0 // pred_fallthru
    _
  // Predicated region
  $region10: #{tpu_custom_call.1} parent=0 // pred_check
    _
  $region11: #{tpu_custom_call.1} parent=0 // pred_check_branch
    %15 = sbr.rel (0) target = $region13
  $region12: #{tpu_custom_call.1} parent=0 // pred_region
    _
  $region13: #{tpu_custom_call.1} parent=0 // pred_fallthru
    _
  %v16 = vld [vmem:[%s0] sm:$0xff]
  %v17 = vld [vmem:[%s0 + $0x8] sm:$0xff]
  %v18 = vld [vmem:[%s1] sm:$0xff]
  %v19 = vld [vmem:[%s1 + $0x8] sm:$0xff]
  %v20 = vld [vmem:[%s2] sm:$0x1]
  %vm21 = vcmp.eq.s32.totalorder %v18, 4294967295
  %vm22 = vcmp.eq.s32.totalorder %v19, 4294967295
  %v23 = vsel %vm21, 0, %v18
  %v24 = vsel %vm22, 0, %v19
  %vm25 = vcmask 261120
  %v26 = vsel %vm25, %v16, -inf
  %27 = vmax.xlane.f32.xlu0 %v26
  %v28 = vpop.xlane.xlu0 %27
  %v29 = vsel %vm25, %v17, -inf
  %30 = vmax.xlane.f32.xlu0 %v29
  %v31 = vpop.xlane.xlu0 %30
  %v32 = vsub.f32 %v16, %v28
  %v33 = vsub.f32 %v17, %v31
  %v34 = vmul.f32 %v32, 1.442695
  %v35 = vpow.pop %v34
  %v36 = vmul.f32 %v33, 1.442695
  %v37 = vpow.pop %v36
  %v38 = vsel %vm25, %v35, 0.0
  %39 = vadd.xlane.f32.xlu0 %v38
  %v40 = vpop.xlane.xlu0 %39
  %v41 = vsel %vm25, %v37, 0.0
  %42 = vadd.xlane.f32.xlu0 %v41
  %v43 = vpop.xlane.xlu0 %42
  %v44 = vlog2.pop %v40
  %v45 = vmul.f32 %v44, 0.6931472
  %v46 = vlog2.pop %v43
  %v47 = vmul.f32 %v46, 0.6931472
  %v48 = vsub.f32 %v32, %v45
  %v49 = vsub.f32 %v33, %v47
  %v50 = vrcp.pop %v40
  %v51 = vrcp.pop %v43
  %v52 = vmul.f32 %v35, %v50
  %v53 = vmul.f32 %v37, %v51
  %v54 = vsub.f32 1.0, %v52
  %v55 = vsub.f32 1.0, %v53
  %v56 = vmul.f32 %v54, %v54
  %v57 = vmul.f32 %v55, %v55
  %v58 = vmul.f32 %v48, %v56
  %v59 = vmul.f32 %v49, %v57
  %v60 = vlaneseq
  %v61 = vshrl.u32 %v60, 7
  %v62 = vsub.s32 0, %v61
  %v63 = vrot.slane %v20, %v62
  %64 = vset.pattern.permute.xlu0 0
  %65 = vperm.xlu0 %64, %v23
  %v66 = vpop.permute.xlu0 %65
  %67 = vset.pattern.permute.xlu0 0
  %68 = vperm.xlu0 %67, %v24
  %v69 = vpop.permute.xlu0 %68
  %vm70 = vcmp.eq.s32.totalorder %v63, %v66
  %vm71 = vcmp.eq.s32.totalorder %v63, %v69
  %v72 = vsel %vm70, %v58, 0.0
  %v73 = vsel %vm71, %v59, 0.0
  %v74 = vsel %vm25, %v72, 0.0
  %75 = vadd.xlane.f32.xlu0 %v74
  %v76 = vpop.xlane.xlu0 %75
  %v77 = vsel %vm25, %v73, 0.0
  %78 = vadd.xlane.f32.xlu0 %v77
  %v79 = vpop.xlane.xlu0 %78
  %v80 = vsel %vm25, %v58, 0.0
  %81 = vadd.xlane.f32.xlu0 %v80
  %v82 = vpop.xlane.xlu0 %81
  %v83 = vsel %vm25, %v59, 0.0
  %84 = vadd.xlane.f32.xlu0 %v83
  %v85 = vpop.xlane.xlu0 %84
  %v86 = vmul.f32 %v82, 0.0032258064
  %v87 = vmul.f32 %v85, 0.0032258064
  %v88 = vmul.f32 %v76, 0.8967742
  %v89 = vmul.f32 %v79, 0.8967742
  %v90 = vadd.f32 %v86, %v88
  %v91 = vadd.f32 %v87, %v89
  %v92 = vsub.f32 -0.6684817, %v90
  %v93 = vsub.f32 -0.6684817, %v91
  %v94 = vsel %vm21, 0.0, 1.0
  %v95 = vsel %vm22, 0.0, 1.0
  %v96 = vsel %vm21, 0.0, %v92
  %v97 = vsel %vm22, 0.0, %v93
  %v98 = vadd.f32 %v96, %v97
  %vm99 = vcmask 7168
  %100 = vst.msk [vmem:[%s3] sm:$0xff] %vm99, %v98
  %v101 = vadd.f32 %v94, %v95
  %102 = vst.msk [vmem:[%s4] sm:$0xff] %vm99, %v101
  // Predicated region
  $region14: #{tpu_custom_call.1} parent=0 // pred_check
    _
  $region15: #{tpu_custom_call.1} parent=0 // pred_check_branch
    %104 = sbr.rel (0) target = $region17
  $region16: #{tpu_custom_call.1} parent=0 // pred_region
    _
  $region17: #{tpu_custom_call.1} parent=0 // pred_fallthru
    _
  // Predicated region
  $region18: #{tpu_custom_call.1} parent=0 // pred_check
    _
  $region19: #{tpu_custom_call.1} parent=0 // pred_check_branch
    %106 = sbr.rel (0) target = $region21
  $region20: #{tpu_custom_call.1} parent=0 // pred_region
    _
  $region21: #{tpu_custom_call.1} parent=0 // pred_fallthru
    _
  // Predicated region
  $region22: #{tpu_custom_call.1} parent=0 // pred_check
    _
  $region23: #{tpu_custom_call.1} parent=0 // pred_check_branch
    %108 = sbr.rel (0) target = $region25
  $region24: #{tpu_custom_call.1} parent=0 // pred_region
    _
  $region25: #{tpu_custom_call.1} parent=0 // pred_fallthru
    _
  // Predicated region
  $region26: #{tpu_custom_call.1} parent=0 // pred_check
    _
  $region27: #{tpu_custom_call.1} parent=0 // pred_check_branch
    %110 = sbr.rel (0) target = $region29
  $region28: #{tpu_custom_call.1} parent=0 // pred_region
    _
  $region29: #{tpu_custom_call.1} parent=0 // pred_fallthru
    _

</llo_original>
